<compile_context>
chip_gen: v7x
topology: tpu7x:2x2x1
jax: 0.10.0
libtpu: 0.0.40
codegen_flags: <defaults>
</compile_context>

<pallas_src>
import jax
import jax.numpy as jnp
from jax.experimental import pallas as pl
from jax.experimental.pallas import tpu as pltpu


def _rmsnorm_kernel(eps):
    def kernel(x_ref, w_ref, o_ref):
        # Compute in float32 (matches torch: data.to(float32).pow(2).mean(-1)).
        x = x_ref[...].astype(jnp.float32)                 # (tr, H) f32
        v = jnp.mean(x * x, axis=-1, keepdims=True)        # (tr, 1) f32
        inv = jax.lax.rsqrt(v + eps)                       # f32 (EUP)
        # torch: data * rsqrt(v+eps) promotes to f32, then weight * ..., cast back.
        y = w_ref[...] * (x * inv)                         # (tr, H) f32
        o_ref[...] = y.astype(o_ref.dtype)
    return kernel


def _choose_row_block(n_rows, hidden, in_bytes, out_bytes,
                      target_rows=1024, vmem_budget=32 * 1024 * 1024):
    """Pick a row tile: as big as possible (<= target_rows), multiple of 16,
    fitting double-buffered in/out tiles plus ~3 f32 temporaries in the budget
    (budget chosen to also fit v7x's 64 MiB VMEM with headroom)."""
    per_row_bytes = hidden * (2 * in_bytes + 2 * out_bytes + 3 * 4)
    cap = max(16, (vmem_budget // per_row_bytes) // 16 * 16)
    rb = int(min(target_rows, cap))
    rows16 = -(-n_rows // 16) * 16
    if rows16 <= rb:
        # Everything fits in one tile; shrink to the padded row count.
        return rows16
    # Rebalance so the last grid step isn't mostly padding (and grid stays >= 2).
    n_steps = -(-n_rows // rb)
    rb = -(-(-(-n_rows // n_steps)) // 16) * 16   # round_up(ceil(R / steps), 16)
    return rb


def rmsnorm(x, weight, eps=1e-6):
    """x: (..., H), weight: (H,). Returns same shape/dtype as x."""
    orig_shape = x.shape
    H = orig_shape[-1]
    x2d = x.reshape(-1, H)
    R = x2d.shape[0]

    in_bytes = jnp.dtype(x.dtype).itemsize
    out_bytes = in_bytes
    row_block = _choose_row_block(R, H, in_bytes, out_bytes)

    # Pad rows up to a multiple of row_block (padded rows -> zeros, sliced off).
    R_pad = -(-R // row_block) * row_block
    if R_pad != R:
        x2d = jnp.pad(x2d, ((0, R_pad - R), (0, 0)))
    grid = (R_pad // row_block,)

    # Cast the gain to f32 once in the wrapper; it is a tiny constant block.
    w2d = weight.astype(jnp.float32).reshape(1, H)

    out = pl.pallas_call(
        _rmsnorm_kernel(eps),
        out_shape=jax.ShapeDtypeStruct((R_pad, H), x.dtype),
        grid_spec=pltpu.PrefetchScalarGridSpec(
            num_scalar_prefetch=0,
            grid=grid,
            in_specs=[
                pl.BlockSpec((row_block, H), lambda i: (i, 0)),  # x rows
                pl.BlockSpec((1, H), lambda i: (0, 0)),          # weight (constant block)
            ],
            out_specs=pl.BlockSpec((row_block, H), lambda i: (i, 0)),
        ),
        compiler_params=pltpu.CompilerParams(
            dimension_semantics=("parallel",),
            vmem_limit_bytes=64 * 1024 * 1024,
        ),
    )(x2d, w2d)

    if R_pad != R:
        out = out[:R]
    return out.reshape(orig_shape)


def rmsnorm_ref(x, weight, eps=1e-6):
    xf = x.astype(jnp.float32)
    v = jnp.mean(xf * xf, axis=-1, keepdims=True)
    y = weight.astype(jnp.float32) * (xf * jax.lax.rsqrt(v + eps))
    return y.astype(x.dtype)


if __name__ == "__main__":
    key = jax.random.PRNGKey(0)
    kx, kw = jax.random.split(key)

    # Small shapes consistent with the module; seq=9 exercises the padding path.
    batch, seq, hidden = 2, 9, 128
    eps = 1e-6

    x = jax.random.normal(kx, (batch, seq, hidden), dtype=jnp.float32).astype(jnp.bfloat16)
    weight = jax.random.normal(kw, (hidden,), dtype=jnp.float32)  # RMSNorm gain

    out = rmsnorm(x, weight, eps=eps)
    out = jax.block_until_ready(out)

    ref = rmsnorm_ref(x, weight, eps=eps)
    assert out.shape == x.shape and out.dtype == x.dtype
    err = jnp.max(jnp.abs(out.astype(jnp.float32) - ref.astype(jnp.float32)))
    assert float(err) < 1e-2, f"mismatch vs reference: {float(err)}"

    print("KERNEL_OK")
</pallas_src>

<mosaic_0001>
module attributes {stable_mosaic.version = 11 : i64} {
  func.func @kernel(%arg0: i32, %arg1: memref<32x128xbf16, #tpu.memory_space<vmem>>, %arg2: memref<1x128xf32, #tpu.memory_space<vmem>>, %arg3: memref<32x128xbf16, #tpu.memory_space<vmem>>) attributes {dimension_semantics = [#tpu.dimension_semantics<parallel>], iteration_bounds = array<i64: 1>, scalar_prefetch = 0 : i64, scratch_operands = 0 : i64, tpu.core_type = #tpu.core_type<tc>, window_params = [{transform_indices = @transform_0, window_bounds = array<i64: 32, 128>}, {pipeline_mode = #tpu.pipeline_mode<synchronous>, transform_indices = @transform_1, window_bounds = array<i64: 1, 128>}, {transform_indices = @transform_2, window_bounds = array<i64: 32, 128>}]} {
    %c0 = arith.constant 0 : index
    %c0_0 = arith.constant 0 : index
    %0 = vector.load %arg1[%c0, %c0_0] : memref<32x128xbf16, #tpu.memory_space<vmem>>, vector<32x128xbf16>
    %1 = arith.extf %0 : vector<32x128xbf16> to vector<32x128xf32>
    %2 = arith.mulf %1, %1 : vector<32x128xf32>
    %cst = arith.constant dense<0.000000e+00> : vector<32xf32>
    %3 = vector.multi_reduction <add>, %2, %cst [1] : vector<32x128xf32> to vector<32xf32>
    %4 = vector.shape_cast %3 : vector<32xf32> to vector<32x1xf32>
    %cst_1 = arith.constant 1.280000e+02 : f32
    %5 = vector.broadcast %cst_1 : f32 to vector<32x1xf32>
    %6 = arith.divf %4, %5 : vector<32x1xf32>
    %cst_2 = arith.constant 9.99999997E-7 : f32
    %7 = vector.broadcast %cst_2 : f32 to vector<32x1xf32>
    %8 = arith.addf %6, %7 : vector<32x1xf32>
    %9 = math.rsqrt %8 : vector<32x1xf32>
    %c0_3 = arith.constant 0 : index
    %c0_4 = arith.constant 0 : index
    %10 = vector.load %arg2[%c0_3, %c0_4] : memref<1x128xf32, #tpu.memory_space<vmem>>, vector<1x128xf32>
    %11 = vector.broadcast %9 : vector<32x1xf32> to vector<32x128xf32>
    %12 = arith.mulf %1, %11 : vector<32x128xf32>
    %13 = vector.broadcast %10 : vector<1x128xf32> to vector<32x128xf32>
    %14 = arith.mulf %13, %12 : vector<32x128xf32>
    %15 = arith.truncf %14 : vector<32x128xf32> to vector<32x128xbf16>
    %c0_5 = arith.constant 0 : index
    %c0_6 = arith.constant 0 : index
    %16 = vector.load %arg3[%c0_5, %c0_6] : memref<32x128xbf16, #tpu.memory_space<vmem>>, vector<32x128xbf16>
    tpu.vector_store %arg3[%c0_5, %c0_6], %15 {strides = array<i32>} : memref<32x128xbf16, #tpu.memory_space<vmem>>, vector<32x128xbf16>,
    return
  }
  func.func @transform_0(%arg0: i32) -> (i32, i32) {
    %c0_i32 = arith.constant 0 : i32
    %c0_i32_0 = arith.constant 0 : i32
    return %arg0, %c0_i32 : i32, i32
  }
  func.func @transform_1(%arg0: i32) -> (i32, i32) {
    %c0_i32 = arith.constant 0 : i32
    %c0_i32_0 = arith.constant 0 : i32
    %c0_i32_1 = arith.constant 0 : i32
    return %c0_i32, %c0_i32_0 : i32, i32
  }
  func.func @transform_2(%arg0: i32) -> (i32, i32) {
    %c0_i32 = arith.constant 0 : i32
    %c0_i32_0 = arith.constant 0 : i32
    return %arg0, %c0_i32 : i32, i32
  }
}

</mosaic_0001>

<llo_original>
// kernel: tpu_custom_call.1
$region0: #{tpu_custom_call.1}
  #allocation0 [shape = 'u32[]', space=smem, size = 0x4, offset = 0x4, fixed_abs, tag = 'smem constant byte address 0x4 - core index']
  #allocation1 [shape = 'u32[144,128]{1,0:T(1,128)}', space=vmem, size = 0x12000, scoped, tag = 'internal scratch']
  %s0 = inlined_call_operand.hbm [shape: bf16[32,128], index: 0, kind: input, shape index: {}]
  %s1 = inlined_call_operand.hbm [shape: f32[1,128], index: 1, kind: input, shape index: {}]
  %s2 = inlined_call_operand.hbm [shape: bf16[32,128], index: 2, kind: output, shape index: {}]
  %s3 = sld [smem:[#allocation0]]
  $region26: #{tpu_custom_call.1} parent=0
    _
  %s5 = ssub.s32 1, %s3
  %s6 = scalar_select 0, %s5, %s3
  $region1: #{tpu_custom_call.1} parent=0
    #allocation2 [shape = 'u8[8192]{0}', space=vmem, size = 0x2000, scoped, tag = 'input window, operand 0, single buffered']
    #allocation3 [shape = 's32[1]{0}', space=sflag, size = 0x4, scoped, tag = 'scoped memory for tpu_custom_call.1']
    #allocation4 [shape = 's32[1]{0}', space=sflag, size = 0x4, scoped, tag = 'scoped memory for tpu_custom_call.1']
    #allocation5 [shape = 'u8[512]{0}', space=vmem, size = 0x400, scoped, tag = 'input window, operand 1, single buffered']
    #allocation6 [shape = 's32[1]{0}', space=sflag, size = 0x4, scoped, tag = 'scoped memory for tpu_custom_call.1']
    #allocation7 [shape = 'u8[8192]{0}', space=vmem, size = 0x2000, scoped, tag = 'output window, operand 0, single buffered']
    %7 = vsyncpa [#allocation3], 0
    %8 = vsyncpa [#allocation6], 0
    %9 = vsyncpa [#allocation4], 0
    // Predicated region
    $region2: #{tpu_custom_call.1} parent=1 // pred_check
      _
    $region3: #{tpu_custom_call.1} parent=1 // pred_check_branch
      %11 = sbr.rel (0) target = $region5
    $region4: #{tpu_custom_call.1} parent=1 // pred_region
      %s13 = ssub.s32 256, 256
      %14 = vsyncadd [#allocation3], %s13
      %s15 = sshll.u32 [#allocation2], 4
      %s16 = int_to_ptr.vmem [resolvable:$true] %s15
      %21 = dma.hbm_to_vmem [thread:$0]  %s0, 256, %s16, [#allocation3], 64, 64, 4
    $region5: #{tpu_custom_call.1} parent=1 // pred_fallthru
      _
    // Predicated region
    $region6: #{tpu_custom_call.1} parent=1 // pred_check
      _
    $region7: #{tpu_custom_call.1} parent=1 // pred_check_branch
      %23 = sbr.rel (0) target = $region9
    $region8: #{tpu_custom_call.1} parent=1 // pred_region
      %s25 = ssub.s32 16, 16
      %26 = vsyncadd [#allocation6], %s25
      %s28 = sshll.u32 [#allocation5], 4
      %s29 = int_to_ptr.vmem [resolvable:$true] %s28
      %31 = dma.hbm_to_vmem [thread:$0]  %s1, 16, %s29, [#allocation6]
    $region9: #{tpu_custom_call.1} parent=1 // pred_fallthru
      _
    // Predicated region
    $region10: #{tpu_custom_call.1} parent=1 // pred_check
      _
    $region11: #{tpu_custom_call.1} parent=1 // pred_check_branch
      %33 = sbr.rel (0) target = $region13
    $region12: #{tpu_custom_call.1} parent=1 // pred_region
      %34 = dma.done [#allocation3], 256
    $region13: #{tpu_custom_call.1} parent=1 // pred_fallthru
      _
    // Predicated region
    $region14: #{tpu_custom_call.1} parent=1 // pred_check
      _
    $region15: #{tpu_custom_call.1} parent=1 // pred_check_branch
      %36 = sbr.rel (0) target = $region17
    $region16: #{tpu_custom_call.1} parent=1 // pred_region
      %37 = dma.done [#allocation6], 16
    $region17: #{tpu_custom_call.1} parent=1 // pred_fallthru
      _
    %v38 = vld [vmem:[#allocation2] sm:$0xf]
    %v39 = vld [vmem:[#allocation2 + $0x4] sm:$0xf]
    %v40 = vld [vmem:[#allocation2 + $0x8] sm:$0xf]
    %v41 = vld [vmem:[#allocation2 + $0xc] sm:$0xf]
    %v42 = vunpack.c.l.bf16 %v38
    %v43 = vunpack.c.l.bf16 %v39
    %v44 = vunpack.c.l.bf16 %v40
    %v45 = vunpack.c.l.bf16 %v41
    %v46 = vmul.f32 %v42, %v42
    %v47 = vmul.f32 %v43, %v43
    %v48 = vmul.f32 %v44, %v44
    %v49 = vmul.f32 %v45, %v45
    %50 = vadd.xlane.f32.xlu0 %v46
    %v51 = vpop.xlane.xlu0 %50
    %52 = vadd.xlane.f32.xlu0 %v47
    %v53 = vpop.xlane.xlu0 %52
    %54 = vadd.xlane.f32.xlu0 %v48
    %v55 = vpop.xlane.xlu0 %54
    %56 = vadd.xlane.f32.xlu0 %v49
    %v57 = vpop.xlane.xlu0 %56
    %v58 = vrcp.pop 128.0
    %v59 = vmul.f32 %v51, %v58
    %v60 = vmul.f32 %v53, %v58
    %v61 = vmul.f32 %v55, %v58
    %v62 = vmul.f32 %v57, %v58
    %v63 = vadd.f32 %v59, 1e-06
    %v64 = vadd.f32 %v60, 1e-06
    %v65 = vadd.f32 %v61, 1e-06
    %v66 = vadd.f32 %v62, 1e-06
    %v67 = vrsqrt.pop %v63
    %v68 = vrsqrt.pop %v64
    %v69 = vrsqrt.pop %v65
    %v70 = vrsqrt.pop %v66
    %v71 = vld [vmem:[#allocation5] sm:$0x1]
    %v72 = vmul.f32 %v42, %v67
    %v73 = vmul.f32 %v43, %v68
    %v74 = vmul.f32 %v44, %v69
    %v75 = vmul.f32 %v45, %v70
    %v77 = vlaneseq
    %v78 = vshrl.u32 %v77, 7
    %v79 = vsub.s32 0, %v78
    %v80 = vrot.slane %v71, %v79
    %v82 = vmul.f32 %v80, %v72
    %v83 = vmul.f32 %v80, %v73
    %v84 = vmul.f32 %v80, %v74
    %v85 = vmul.f32 %v80, %v75
    %v86 = vpack.c.bf16 %v83, %v82
    %v87 = vpack.c.bf16 %v85, %v84
    %v90 = vunpack.c.l.b16 %v86
    %v91 = vunpack.c.h.b16 %v86
    %v92 = vunpack.c.l.b16 %v87
    %v93 = vunpack.c.h.b16 %v87
    %v94 = vpack.c.b16 %v90, %v90
    %v95 = vpack.c.b16 %v91, %v91
    %v96 = vpack.c.b16 %v92, %v92
    %v97 = vpack.c.b16 %v93, %v93
    %102 = vst [vmem:[#allocation7] sm:$0xf] %v94
    %103 = vst [vmem:[#allocation7 + $0x4] sm:$0xf] %v95
    %104 = vst [vmem:[#allocation7 + $0x8] sm:$0xf] %v96
    %105 = vst [vmem:[#allocation7 + $0xc] sm:$0xf] %v97
    // Predicated region
    $region18: #{tpu_custom_call.1} parent=1 // pred_check
      _
    $region19: #{tpu_custom_call.1} parent=1 // pred_check_branch
      %107 = sbr.rel (0) target = $region21
    $region20: #{tpu_custom_call.1} parent=1 // pred_region
      %s109 = ssub.s32 256, 256
      %110 = vsyncadd [#allocation4], %s109
      %s111 = sshll.u32 [#allocation7], 4
      %s112 = int_to_ptr.vmem [resolvable:$true] %s111
      %117 = dma.vmem_to_hbm [thread:$0]  %s112, 256, %s2, [#allocation4], 64, 64, 4
    $region21: #{tpu_custom_call.1} parent=1 // pred_fallthru
      _
    // Predicated region
    $region22: #{tpu_custom_call.1} parent=1 // pred_check
      _
    $region23: #{tpu_custom_call.1} parent=1 // pred_check_branch
      %119 = sbr.rel (0) target = $region25
    $region24: #{tpu_custom_call.1} parent=1 // pred_region
      %120 = dma.done [#allocation4], 256
    $region25: #{tpu_custom_call.1} parent=1 // pred_fallthru
      _
    %121 = vsyncpa [#allocation3], 1
    %122 = vsyncpa [#allocation6], 1
    %123 = vsyncpa [#allocation4], 1

</llo_original>
